<compile_context>
chip_gen: v6e
topology: v6e:2x2x1
jax: 0.10.0
libtpu: 0.0.40
codegen_flags: <defaults>
</compile_context>

<pallas_src>
import functools

import jax
import jax.numpy as jnp
from jax.experimental import pallas as pl
from jax.experimental.pallas import tpu as pltpu

_LANE = 128
_TARGET_BLOCK_BYTES = 4 * 1024 * 1024      # ~4 MiB blocks (v6e/v7x sweet spot)
_SPLIT_THRESHOLD_BYTES = 512 * 1024        # above this, force >= 2 grid steps (v7x: 2 TCs)
_RAGGED_TILE_ELEMS_CAP = 64 * 1024         # cap for the rare (1, n) ragged path


def _relu_kernel(x_ref, o_ref):
    # Pure VPU elementwise max over the whole VMEM tile; zero is in the ref dtype.
    o_ref[...] = jnp.maximum(x_ref[...], jnp.zeros((), dtype=o_ref.dtype))


def _round_up(a: int, b: int) -> int:
    return ((a + b - 1) // b) * b


def _relu_impl(x: jax.Array, *, inplace: bool) -> jax.Array:
    orig_shape = x.shape
    dtype = x.dtype
    n = x.size
    itemsize = jnp.dtype(dtype).itemsize
    # Sublane multiple for this dtype: 8 (f32), 16 (bf16), 32 (int8/fp8).
    sublane = max(8, 32 // itemsize)
    total_bytes = n * itemsize

    flat = x.reshape(-1)

    if n % _LANE == 0:
        # Common path (spec shape 1*72*56*56 included): lane-dense (rows, 128) slab,
        # every store is an unmasked full-lane vst.
        rows = n // _LANE
        slab = flat.reshape(rows, _LANE)
        if total_bytes <= _SPLIT_THRESHOLD_BYTES:
            tr = rows  # single block == full array dims (no divisibility requirement)
        else:
            tile_rows = max(sublane, _TARGET_BLOCK_BYTES // (_LANE * itemsize))
            # At least a 2-way split so both v7x TensorCores are engaged.
            tr = min(_round_up(tile_rows, sublane),
                     _round_up(pl.cdiv(rows, 2), sublane))
        grid = (pl.cdiv(rows, tr),)
        block_shape = (tr, _LANE)
        index_map = lambda i: (i, 0)
        block_vmem = tr * _LANE * itemsize
    else:
        # Rare ragged path: view as (1, n), tile along lanes, let Pallas mask the
        # ragged last block.  No jnp.pad / output slice -> no extra HBM copies.
        slab = flat.reshape(1, n)
        if total_bytes <= _SPLIT_THRESHOLD_BYTES:
            te = n  # single block == full array dims
        else:
            te = min(_RAGGED_TILE_ELEMS_CAP, _round_up(pl.cdiv(n, 2), _LANE))
        grid = (pl.cdiv(n, te),)
        block_shape = (1, te)
        index_map = lambda i: (0, i)
        block_vmem = 8 * te * itemsize  # worst-case sublane padding for a 1-row block

    # Double-buffered input + output = 4x block footprint; add margin.  Explicitly
    # raising the scoped-VMEM limit keeps 4 MiB blocks legal on v5e's 16 MiB default
    # while staying well under every generation's physical VMEM.
    vmem_limit = min(48 * 1024 * 1024,
                     max(16 * 1024 * 1024, 4 * block_vmem + 4 * 1024 * 1024))

    extra = {"input_output_aliases": {0: 0}} if inplace else {}

    out = pl.pallas_call(
        _relu_kernel,
        out_shape=jax.ShapeDtypeStruct(slab.shape, dtype),
        grid=grid,
        in_specs=[pl.BlockSpec(block_shape, index_map)],
        out_specs=pl.BlockSpec(block_shape, index_map),
        compiler_params=pltpu.CompilerParams(
            dimension_semantics=("parallel",),
            vmem_limit_bytes=vmem_limit,
        ),
        cost_estimate=pl.CostEstimate(
            flops=n,
            transcendentals=0,
            bytes_accessed=2 * total_bytes,
        ),
        **extra,
    )(slab)

    return out.reshape(orig_shape)


# Functional (out-of-place) version: no aliasing -> no defensive copy under jit.
_relu_jit = jax.jit(functools.partial(_relu_impl, inplace=False))
# True in-place version mirroring ReLU(inplace=True): donated input + io aliasing.
_relu_jit_inplace = jax.jit(functools.partial(_relu_impl, inplace=True),
                            donate_argnums=(0,))


def relu_pallas(x: jax.Array, *, donate: bool = False) -> jax.Array:
    """ReLU over an arbitrary-shaped (e.g. NCHW) tensor via a Pallas TPU kernel."""
    if x.size == 0:
        return x
    return _relu_jit_inplace(x) if donate else _relu_jit(x)


class M:
    """JAX mirror of the PyTorch module (a single ReLU)."""

    def __init__(self):
        pass  # ReLU has no parameters

    def __call__(self, x24: jax.Array) -> jax.Array:
        x25 = relu_pallas(x24)
        return x25


if __name__ == "__main__":
    import warnings
    warnings.filterwarnings("ignore")

    model = M()

    # Small NCHW input consistent with the module's forward (ReLU on a 4-D tensor).
    x24 = jax.random.normal(jax.random.PRNGKey(0), (2, 4, 16, 16), dtype=jnp.float32)
    y = jax.block_until_ready(model(x24))
    assert y.shape == x24.shape and y.dtype == x24.dtype
    assert jnp.allclose(y, jnp.maximum(x24, 0.0)), "Pallas ReLU mismatch (small)"

    # Spec-sized activation (1, 72, 56, 56): 1764 lane-rows (~883 KiB) -> split into
    # two 'parallel' blocks so both v7x TensorCores get work.
    x_spec = jax.random.normal(jax.random.PRNGKey(1), (1, 72, 56, 56), dtype=jnp.float32)
    y_spec = jax.block_until_ready(model(x_spec))
    assert y_spec.shape == x_spec.shape and y_spec.dtype == x_spec.dtype
    assert jnp.allclose(y_spec, jnp.maximum(x_spec, 0.0)), "Pallas ReLU mismatch (spec)"

    # Ragged element count (not a multiple of 128) -> (1, n) masked path, no pad/slice.
    x_rag = jax.random.normal(jax.random.PRNGKey(2), (3, 5, 11), dtype=jnp.float32)
    y_rag = jax.block_until_ready(relu_pallas(x_rag))
    assert jnp.allclose(y_rag, jnp.maximum(x_rag, 0.0)), "Pallas ReLU mismatch (ragged)"

    # Donated in-place variant (mirrors ReLU(inplace=True)); reference computed first
    # because the input buffer is consumed.
    x_inp = jax.random.normal(jax.random.PRNGKey(3), (2, 4, 16, 16), dtype=jnp.float32)
    expected = jax.block_until_ready(jnp.maximum(x_inp, 0.0))
    y_inp = jax.block_until_ready(relu_pallas(x_inp, donate=True))
    assert jnp.allclose(y_inp, expected), "Pallas ReLU mismatch (inplace)"

    print("KERNEL_OK")
</pallas_src>

<mosaic_0001>
module attributes {stable_mosaic.version = 11 : i64} {
  func.func @_relu_kernel(%arg0: i32, %arg1: memref<16x128xf32, #tpu.memory_space<vmem>>, %arg2: memref<16x128xf32, #tpu.memory_space<vmem>>) attributes {dimension_semantics = [#tpu.dimension_semantics<parallel>], iteration_bounds = array<i64: 1>, scalar_prefetch = 0 : i64, scratch_operands = 0 : i64, tpu.core_type = #tpu.core_type<tc>, window_params = [{transform_indices = @transform_0, window_bounds = array<i64: 16, 128>}, {transform_indices = @transform_1, window_bounds = array<i64: 16, 128>}]} {
    %c0 = arith.constant 0 : index
    %c0_0 = arith.constant 0 : index
    %0 = vector.load %arg1[%c0, %c0_0] : memref<16x128xf32, #tpu.memory_space<vmem>>, vector<16x128xf32>
    %cst = arith.constant 0.000000e+00 : f32
    %1 = vector.broadcast %cst : f32 to vector<16x128xf32>
    %2 = arith.maximumf %0, %1 : vector<16x128xf32>
    %c0_1 = arith.constant 0 : index
    %c0_2 = arith.constant 0 : index
    %3 = vector.load %arg2[%c0_1, %c0_2] : memref<16x128xf32, #tpu.memory_space<vmem>>, vector<16x128xf32>
    tpu.vector_store %arg2[%c0_1, %c0_2], %2 {strides = array<i32>} : memref<16x128xf32, #tpu.memory_space<vmem>>, vector<16x128xf32>,
    return
  }
  func.func @transform_0(%arg0: i32) -> (i32, i32) {
    %c0_i32 = arith.constant 0 : i32
    %c0_i32_0 = arith.constant 0 : i32
    return %arg0, %c0_i32 : i32, i32
  }
  func.func @transform_1(%arg0: i32) -> (i32, i32) {
    %c0_i32 = arith.constant 0 : i32
    %c0_i32_0 = arith.constant 0 : i32
    return %arg0, %c0_i32 : i32, i32
  }
}

</mosaic_0001>

<llo_original>
// kernel: _relu_impl.1
$region0: #{_relu_impl.1}
  #allocation0 [shape = 'u32[]', space=smem, size = 0x4, offset = 0x4, fixed_abs, tag = 'smem constant byte address 0x4 - core index']
  #allocation1 [shape = 'u32[144,128]{1,0:T(1,128)}', space=vmem, size = 0x12000, scoped, tag = 'internal scratch']
  %s0 = inlined_call_operand.vmem [shape: f32[16,128], index: 0, kind: input, shape index: {}]
  %s1 = inlined_call_operand.vmem [shape: f32[16,128], index: 1, kind: output, shape index: {}]
  %s2 = sld [smem:[#allocation0]]
  $region14: #{_relu_impl.1} parent=0
    _
  %s4 = ssub.s32 1, %s2
  %s5 = scalar_select 0, %s4, %s2
  // Predicated region
  $region2: #{_relu_impl.1} parent=0 // pred_check
    _
  $region3: #{_relu_impl.1} parent=0 // pred_check_branch
    %7 = sbr.rel (0) target = $region5
  $region4: #{_relu_impl.1} parent=0 // pred_region
    _
  $region5: #{_relu_impl.1} parent=0 // pred_fallthru
    _
  %v8 = vld [vmem:[%s0] sm:$0xff]
  %v9 = vld [vmem:[%s0 + $0x8] sm:$0xff]
  %v10 = vmax.f32 %v8, 0.0
  %v11 = vmax.f32 %v9, 0.0
  %12 = vst [vmem:[%s1] sm:$0xff] %v10
  %13 = vst [vmem:[%s1 + $0x8] sm:$0xff] %v11
  // Predicated region
  $region6: #{_relu_impl.1} parent=0 // pred_check
    _
  $region7: #{_relu_impl.1} parent=0 // pred_check_branch
    %15 = sbr.rel (0) target = $region9
  $region8: #{_relu_impl.1} parent=0 // pred_region
    _
  $region9: #{_relu_impl.1} parent=0 // pred_fallthru
    _
  // Predicated region
  $region10: #{_relu_impl.1} parent=0 // pred_check
    _
  $region11: #{_relu_impl.1} parent=0 // pred_check_branch
    %17 = sbr.rel (0) target = $region13
  $region12: #{_relu_impl.1} parent=0 // pred_region
    _
  $region13: #{_relu_impl.1} parent=0 // pred_fallthru
    _

</llo_original>
